<compile_context>
chip_gen: v5e
topology: v5e:2x2
jax: 0.10.0
libtpu: 0.0.40
codegen_flags: <defaults>
</compile_context>

<pallas_src>
import jax
import jax.numpy as jnp
from jax import lax
from jax.experimental import pallas as pl
from jax.experimental.pallas import tpu as pltpu

LANES = 128
SUBLANES = 8


def _make_l2_kernel(n_elems, tile_rows, num_tiles):
    """Builds the kernel with all sizing/masking decisions baked in statically."""
    full_rows, rem = divmod(n_elems, LANES)
    # True iff the grid coverage (num_tiles * tile_rows * 128 slots) exceeds
    # the real element count -> the last tile needs masking.
    ragged = (num_tiles * tile_rows * LANES) != n_elems
    grouped = (tile_rows % SUBLANES) == 0

    def _emit(sq, out_ref):
        if grouped:
            # (tile_rows, 128) -> (tile_rows/8, 8, 128); summing axis 0 is pure
            # VPU vreg adds (no cross-lane/sublane XLU work in the hot loop).
            part = jnp.sum(
                sq.reshape(tile_rows // SUBLANES, SUBLANES, LANES), axis=0)
        else:
            # Tiny-input fallback (rows < 8 or not a multiple of 8): one small
            # cross-sublane reduce, then place it in sublane 0 of the block.
            col = jnp.sum(sq, axis=0, keepdims=True)              # (1, 128)
            rid = lax.broadcasted_iota(jnp.int32, (SUBLANES, LANES), 0)
            part = jnp.where(rid == 0,
                             jnp.broadcast_to(col, (SUBLANES, LANES)), 0.0)
        out_ref[...] = part.reshape(1, SUBLANES, LANES)

    def kernel(x_ref, y_ref, out_ref):
        x = x_ref[...].astype(jnp.float32)
        y = y_ref[...].astype(jnp.float32)
        d = x - 2.0 * y + 1.0          # logits - (2*labels - 1), fused
        sq = d * d

        if ragged:
            i = pl.program_id(0)

            @pl.when(i < num_tiles - 1)
            def _():
                _emit(sq, out_ref)

            @pl.when(i == num_tiles - 1)
            def _():
                row = lax.broadcasted_iota(jnp.int32, (tile_rows, LANES), 0)
                lane = lax.broadcasted_iota(jnp.int32, (tile_rows, LANES), 1)
                grow = i * tile_rows + row
                valid = (grow < full_rows) | ((grow == full_rows) & (lane < rem))
                _emit(jnp.where(valid, sq, 0.0), out_ref)
        else:
            _emit(sq, out_ref)

    return kernel


def l2_loss(logits, labels, *, tile_rows=4096):
    """Pallas implementation of L2Loss.forward. Returns a scalar float32."""
    assert logits.shape == labels.shape, "logits/labels must match shapes"
    n_elems = int(logits.size)
    assert n_elems > 0

    # Flatten (copy-free) and keep the original dtype; cast happens in-kernel.
    fx = logits.reshape(-1)
    fy = labels.reshape(-1)

    # Only pad if the element count is not lane-divisible; padded slots are
    # masked in the kernel, so the pad value is irrelevant.
    pad = (-n_elems) % LANES
    if pad:
        fx = jnp.pad(fx, (0, pad))
        fy = jnp.pad(fy, (0, pad))
    rows = (n_elems + pad) // LANES
    sx = fx.reshape(rows, LANES)
    sy = fy.reshape(rows, LANES)

    # Row tile: multiple of 8 sublanes; for small inputs the block simply
    # equals the full row extent (always a legal block shape).
    tile_rows = max(SUBLANES, (int(tile_rows) // SUBLANES) * SUBLANES)
    tile = tile_rows if rows >= tile_rows else rows
    num_tiles = -(-rows // tile)

    kernel = _make_l2_kernel(n_elems, tile, num_tiles)

    partials = pl.pallas_call(
        kernel,
        out_shape=jax.ShapeDtypeStruct((num_tiles, SUBLANES, LANES),
                                       jnp.float32),
        grid_spec=pltpu.PrefetchScalarGridSpec(
            num_scalar_prefetch=0,
            grid=(num_tiles,),
            in_specs=[
                pl.BlockSpec((tile, LANES), lambda i: (i, 0)),
                pl.BlockSpec((tile, LANES), lambda i: (i, 0)),
            ],
            out_specs=pl.BlockSpec((1, SUBLANES, LANES), lambda i: (i, 0, 0)),
        ),
        compiler_params=pltpu.CompilerParams(
            dimension_semantics=("parallel",)),
    )(sx, sy)

    inv_n = 1.0 / float(n_elems)
    return jnp.sum(partials) * inv_n


if __name__ == "__main__":
    key = jax.random.PRNGKey(0)
    k1, k2 = jax.random.split(key)
    # Shapes consistent with a typical conv-head loss: NCHW logits + labels.
    logits = jax.random.normal(k1, (2, 4, 16, 16), dtype=jnp.float32)
    labels = jax.random.uniform(k2, (2, 4, 16, 16), dtype=jnp.float32)

    loss = jax.block_until_ready(l2_loss(logits, labels))

    # Pure-JAX reference check.
    ref = jnp.mean((logits - (2.0 * labels - 1.0)) ** 2)
    assert jnp.allclose(loss, ref, rtol=1e-5, atol=1e-6), (loss, ref)

    print("KERNEL_OK")
</pallas_src>

<mosaic_0001>
module attributes {stable_mosaic.version = 11 : i64} {
  func.func @kernel(%arg0: i32, %arg1: memref<16x128xf32, #tpu.memory_space<vmem>>, %arg2: memref<16x128xf32, #tpu.memory_space<vmem>>, %arg3: memref<1x8x128xf32, #tpu.memory_space<vmem>>) attributes {dimension_semantics = [#tpu.dimension_semantics<parallel>], iteration_bounds = array<i64: 1>, scalar_prefetch = 0 : i64, scratch_operands = 0 : i64, tpu.core_type = #tpu.core_type<tc>, window_params = [{transform_indices = @transform_0, window_bounds = array<i64: 16, 128>}, {transform_indices = @transform_1, window_bounds = array<i64: 16, 128>}, {transform_indices = @transform_2, window_bounds = array<i64: 1, 8, 128>}]} {
    %c0 = arith.constant 0 : index
    %c0_0 = arith.constant 0 : index
    %0 = vector.load %arg1[%c0, %c0_0] : memref<16x128xf32, #tpu.memory_space<vmem>>, vector<16x128xf32>
    %c0_1 = arith.constant 0 : index
    %c0_2 = arith.constant 0 : index
    %1 = vector.load %arg2[%c0_1, %c0_2] : memref<16x128xf32, #tpu.memory_space<vmem>>, vector<16x128xf32>
    %cst = arith.constant 2.000000e+00 : f32
    %2 = vector.broadcast %cst : f32 to vector<16x128xf32>
    %3 = arith.mulf %2, %1 : vector<16x128xf32>
    %4 = arith.subf %0, %3 : vector<16x128xf32>
    %cst_3 = arith.constant 1.000000e+00 : f32
    %5 = vector.broadcast %cst_3 : f32 to vector<16x128xf32>
    %6 = arith.addf %4, %5 : vector<16x128xf32>
    %7 = arith.mulf %6, %6 : vector<16x128xf32>
    %8 = vector.shape_cast %7 : vector<16x128xf32> to vector<2x8x128xf32>
    %cst_4 = arith.constant dense<0.000000e+00> : vector<8x128xf32>
    %9 = vector.multi_reduction <add>, %8, %cst_4 [0] : vector<2x8x128xf32> to vector<8x128xf32>
    %10 = vector.shape_cast %9 : vector<8x128xf32> to vector<1x8x128xf32>
    %c0_5 = arith.constant 0 : index
    %c0_6 = arith.constant 0 : index
    %c0_7 = arith.constant 0 : index
    %11 = vector.load %arg3[%c0_5, %c0_6, %c0_7] : memref<1x8x128xf32, #tpu.memory_space<vmem>>, vector<1x8x128xf32>
    tpu.vector_store %arg3[%c0_5, %c0_6, %c0_7], %10 {strides = array<i32>} : memref<1x8x128xf32, #tpu.memory_space<vmem>>, vector<1x8x128xf32>,
    return
  }
  func.func @transform_0(%arg0: i32) -> (i32, i32) {
    %c0_i32 = arith.constant 0 : i32
    %c0_i32_0 = arith.constant 0 : i32
    return %arg0, %c0_i32 : i32, i32
  }
  func.func @transform_1(%arg0: i32) -> (i32, i32) {
    %c0_i32 = arith.constant 0 : i32
    %c0_i32_0 = arith.constant 0 : i32
    return %arg0, %c0_i32 : i32, i32
  }
  func.func @transform_2(%arg0: i32) -> (i32, i32, i32) {
    %c0_i32 = arith.constant 0 : i32
    %c0_i32_0 = arith.constant 0 : i32
    %c0_i32_1 = arith.constant 0 : i32
    return %arg0, %c0_i32, %c0_i32_0 : i32, i32, i32
  }
}

</mosaic_0001>

<llo_original>
// kernel: tpu_custom_call.1
$region0: #{tpu_custom_call.1}
  #allocation0 [shape = 'u32[]', space=smem, size = 0x4, offset = 0x4, fixed_abs, tag = 'smem constant byte address 0x4 - core index']
  #allocation1 [shape = 'u32[72,128]{1,0:T(1,128)}', space=vmem, size = 0x9000, scoped, tag = 'internal scratch']
  %s0 = inlined_call_operand.hbm [shape: f32[16,128], index: 0, kind: input, shape index: {}]
  %s1 = inlined_call_operand.hbm [shape: f32[16,128], index: 1, kind: input, shape index: {}]
  %s2 = inlined_call_operand.hbm [shape: f32[1,8,128], index: 2, kind: output, shape index: {}]
  %s3 = sld [smem:[#allocation0]]
  $region26: #{tpu_custom_call.1} parent=0
    _
  %s5 = ssub.s32 1, %s3
  %s6 = scalar_select 0, %s5, %s3
  $region1: #{tpu_custom_call.1} parent=0
    #allocation2 [shape = 'u8[8192]{0}', space=vmem, size = 0x2000, scoped, tag = 'input window, operand 0, single buffered']
    #allocation3 [shape = 's32[1]{0}', space=sflag, size = 0x4, scoped, tag = 'scoped memory for tpu_custom_call.1']
    #allocation4 [shape = 's32[1]{0}', space=sflag, size = 0x4, scoped, tag = 'scoped memory for tpu_custom_call.1']
    #allocation5 [shape = 'u8[8192]{0}', space=vmem, size = 0x2000, scoped, tag = 'input window, operand 1, single buffered']
    #allocation6 [shape = 's32[1]{0}', space=sflag, size = 0x4, scoped, tag = 'scoped memory for tpu_custom_call.1']
    #allocation7 [shape = 'u8[4096]{0}', space=vmem, size = 0x1000, scoped, tag = 'output window, operand 0, single buffered']
    %7 = vsyncpa [#allocation3], 0
    %8 = vsyncpa [#allocation6], 0
    %9 = vsyncpa [#allocation4], 0
    // Predicated region
    $region2: #{tpu_custom_call.1} parent=1 // pred_check
      _
    $region3: #{tpu_custom_call.1} parent=1 // pred_check_branch
      %11 = sbr.rel (0) target = $region5
    $region4: #{tpu_custom_call.1} parent=1 // pred_region
      %13 = vsyncadd [#allocation3], 0
      %s14 = sshll.u32 %s0, 4
      %s15 = int_to_ptr.hbm [resolvable:$true] %s14
      %s16 = sshll.u32 [#allocation2], 4
      %s17 = int_to_ptr.vmem [resolvable:$true] %s16
      %22 = dma.hbm_to_vmem [thread:$0]  %s15, 256, %s17, [#allocation3], 128, 128, 8
    $region5: #{tpu_custom_call.1} parent=1 // pred_fallthru
      _
    // Predicated region
    $region6: #{tpu_custom_call.1} parent=1 // pred_check
      _
    $region7: #{tpu_custom_call.1} parent=1 // pred_check_branch
      %24 = sbr.rel (0) target = $region9
    $region8: #{tpu_custom_call.1} parent=1 // pred_region
      %26 = vsyncadd [#allocation6], 0
      %s27 = sshll.u32 %s1, 4
      %s28 = int_to_ptr.hbm [resolvable:$true] %s27
      %s29 = sshll.u32 [#allocation5], 4
      %s30 = int_to_ptr.vmem [resolvable:$true] %s29
      %35 = dma.hbm_to_vmem [thread:$0]  %s28, 256, %s30, [#allocation6], 128, 128, 8
    $region9: #{tpu_custom_call.1} parent=1 // pred_fallthru
      _
    // Predicated region
    $region10: #{tpu_custom_call.1} parent=1 // pred_check
      _
    $region11: #{tpu_custom_call.1} parent=1 // pred_check_branch
      %37 = sbr.rel (0) target = $region13
    $region12: #{tpu_custom_call.1} parent=1 // pred_region
      %39 = dma.done [#allocation3], 256
    $region13: #{tpu_custom_call.1} parent=1 // pred_fallthru
      _
    // Predicated region
    $region14: #{tpu_custom_call.1} parent=1 // pred_check
      _
    $region15: #{tpu_custom_call.1} parent=1 // pred_check_branch
      %41 = sbr.rel (0) target = $region17
    $region16: #{tpu_custom_call.1} parent=1 // pred_region
      %43 = dma.done [#allocation6], 256
    $region17: #{tpu_custom_call.1} parent=1 // pred_fallthru
      _
    %v44 = vld [vmem:[#allocation2] sm:$0xff]
    %v45 = vld [vmem:[#allocation2 + $0x8] sm:$0xff]
    %v46 = vld [vmem:[#allocation5] sm:$0xff]
    %v47 = vld [vmem:[#allocation5 + $0x8] sm:$0xff]
    %v48 = vmul.f32 %v46, 2.0
    %v49 = vmul.f32 %v47, 2.0
    %v50 = vsub.f32 %v44, %v48
    %v51 = vsub.f32 %v45, %v49
    %v52 = vadd.f32 %v50, 1.0
    %v53 = vadd.f32 %v51, 1.0
    %v54 = vmul.f32 %v52, %v52
    %v55 = vmul.f32 %v53, %v53
    %v56 = vadd.f32 %v54, %v55
    %57 = vst [vmem:[#allocation7] sm:$0xff] %v56
    // Predicated region
    $region18: #{tpu_custom_call.1} parent=1 // pred_check
      _
    $region19: #{tpu_custom_call.1} parent=1 // pred_check_branch
      %59 = sbr.rel (0) target = $region21
    $region20: #{tpu_custom_call.1} parent=1 // pred_region
      %61 = vsyncadd [#allocation4], 0
      %s63 = sshll.u32 [#allocation7], 4
      %s64 = int_to_ptr.vmem [resolvable:$true] %s63
      %s65 = sshll.u32 %s2, 4
      %s66 = int_to_ptr.hbm [resolvable:$true] %s65
      %68 = dma.vmem_to_hbm [thread:$0]  %s64, 128, %s66, [#allocation4]
    $region21: #{tpu_custom_call.1} parent=1 // pred_fallthru
      _
    // Predicated region
    $region22: #{tpu_custom_call.1} parent=1 // pred_check
      _
    $region23: #{tpu_custom_call.1} parent=1 // pred_check_branch
      %70 = sbr.rel (0) target = $region25
    $region24: #{tpu_custom_call.1} parent=1 // pred_region
      %72 = dma.done [#allocation4], 128
    $region25: #{tpu_custom_call.1} parent=1 // pred_fallthru
      _
    %73 = vsyncpa [#allocation3], 1
    %74 = vsyncpa [#allocation6], 1
    %75 = vsyncpa [#allocation4], 1

</llo_original>
